<compile_context>
chip_gen: v7x
topology: tpu7x:2x2x1
jax: 0.10.0
libtpu: 0.0.40
codegen_flags: <defaults>
</compile_context>

<pallas_src>
import functools
import math

import jax
import jax.numpy as jnp
from jax import lax
from jax.experimental import pallas as pl
from jax.experimental.pallas import tpu as pltpu


# ----------------------------------------------------------------------------
# Helpers
# ----------------------------------------------------------------------------
def _round_up(x, m):
    return ((x + m - 1) // m) * m


def _pick_tile(dim, target, align):
    """Largest tile <= target that divides dim and is a multiple of align,
    falling back to the full dimension (always a legal BlockSpec block)."""
    if dim <= target:
        return dim
    t = (target // align) * align
    while t >= align:
        if dim % t == 0:
            return t
        t -= align
    return dim


# Weights up to this many bytes stay resident in VMEM (constant index_map, no
# K-reduction grid axis). Conservative for v7x's 32 MiB scoped-VMEM default.
_RESIDENT_W_BYTES = 8 * 1024 * 1024


# ----------------------------------------------------------------------------
# Fused QKV projection.
#   xq/xk/xv: (M, E); w: (3, E, E) = [wq^T, wk^T, wv^T]; b: (3, 1, E)
#   out: (3, M, E)   (q = out[0], k = out[1], v = out[2])
# ----------------------------------------------------------------------------
def _qkv_proj_resident_kernel(xq_ref, xk_ref, xv_ref, w_ref, b_ref, o_ref):
    # Full-K dot per projection; the stacked weight has a constant index_map so
    # it is DMA'd from HBM once and stays resident across all m-tiles.  No f32
    # accumulator read-modify-write.
    for i, x_ref in enumerate((xq_ref, xk_ref, xv_ref)):
        y = jnp.dot(x_ref[...], w_ref[i], preferred_element_type=jnp.float32)
        o_ref[i] = (y + b_ref[i]).astype(o_ref.dtype)


def _qkv_proj_ktiled_kernel(xq_ref, xk_ref, xv_ref, w_ref, b_ref, o_ref, acc_ref):
    @pl.when(pl.program_id(1) == 0)
    def _():
        acc_ref[...] = jnp.zeros_like(acc_ref)

    acc_ref[0] += jnp.dot(xq_ref[...], w_ref[0], preferred_element_type=jnp.float32)
    acc_ref[1] += jnp.dot(xk_ref[...], w_ref[1], preferred_element_type=jnp.float32)
    acc_ref[2] += jnp.dot(xv_ref[...], w_ref[2], preferred_element_type=jnp.float32)

    @pl.when(pl.program_id(1) == pl.num_programs(1) - 1)
    def _():
        o_ref[...] = (acc_ref[...] + b_ref[...]).astype(o_ref.dtype)


def pallas_qkv_projection(xq, xk, xv, w_qkv, b_qkv, *, out_dtype):
    M, E = xq.shape
    tm = _pick_tile(M, 256, 8)

    if w_qkv.size * jnp.dtype(w_qkv.dtype).itemsize <= _RESIDENT_W_BYTES:
        return pl.pallas_call(
            _qkv_proj_resident_kernel,
            out_shape=jax.ShapeDtypeStruct((3, M, E), out_dtype),
            grid=(M // tm,),
            in_specs=[
                pl.BlockSpec((tm, E), lambda m: (m, 0)),       # xq
                pl.BlockSpec((tm, E), lambda m: (m, 0)),       # xk
                pl.BlockSpec((tm, E), lambda m: (m, 0)),       # xv
                pl.BlockSpec((3, E, E), lambda m: (0, 0, 0)),  # weights (resident)
                pl.BlockSpec((3, 1, E), lambda m: (0, 0, 0)),  # biases (resident)
            ],
            out_specs=pl.BlockSpec((3, tm, E), lambda m: (0, m, 0)),
            compiler_params=pltpu.CompilerParams(
                dimension_semantics=("parallel",)),
        )(xq, xk, xv, w_qkv, b_qkv)

    # Fallback: K-tiled accumulator version for very large E.
    tk = _pick_tile(E, 256, 128)
    return pl.pallas_call(
        _qkv_proj_ktiled_kernel,
        out_shape=jax.ShapeDtypeStruct((3, M, E), out_dtype),
        grid=(M // tm, E // tk),
        in_specs=[
            pl.BlockSpec((tm, tk), lambda m, k: (m, k)),
            pl.BlockSpec((tm, tk), lambda m, k: (m, k)),
            pl.BlockSpec((tm, tk), lambda m, k: (m, k)),
            pl.BlockSpec((3, tk, E), lambda m, k: (0, k, 0)),
            pl.BlockSpec((3, 1, E), lambda m, k: (0, 0, 0)),
        ],
        out_specs=pl.BlockSpec((3, tm, E), lambda m, k: (0, m, 0)),
        scratch_shapes=[pltpu.VMEM((3, tm, E), jnp.float32)],
        compiler_params=pltpu.CompilerParams(
            dimension_semantics=("parallel", "arbitrary")),
    )(xq, xk, xv, w_qkv, b_qkv)


# ----------------------------------------------------------------------------
# Linear: y = x @ w_t + b   (w_t already transposed: (K, N))
# ----------------------------------------------------------------------------
def _linear_resident_kernel(x_ref, w_ref, b_ref, o_ref):
    y = jnp.dot(x_ref[...], w_ref[...], preferred_element_type=jnp.float32)
    o_ref[...] = (y + b_ref[...]).astype(o_ref.dtype)


def _linear_ktiled_kernel(x_ref, w_ref, b_ref, o_ref, acc_ref):
    @pl.when(pl.program_id(2) == 0)
    def _():
        acc_ref[...] = jnp.zeros_like(acc_ref)

    acc_ref[...] += jnp.dot(x_ref[...], w_ref[...],
                            preferred_element_type=jnp.float32)

    @pl.when(pl.program_id(2) == pl.num_programs(2) - 1)
    def _():
        o_ref[...] = (acc_ref[...] + b_ref[...]).astype(o_ref.dtype)


def pallas_linear(x, w_t, b, *, out_dtype=jnp.float32):
    M, K = x.shape
    _, N = w_t.shape
    tm = _pick_tile(M, 256, 8)

    if w_t.size * jnp.dtype(w_t.dtype).itemsize <= _RESIDENT_W_BYTES:
        return pl.pallas_call(
            _linear_resident_kernel,
            out_shape=jax.ShapeDtypeStruct((M, N), out_dtype),
            grid=(M // tm,),
            in_specs=[
                pl.BlockSpec((tm, K), lambda m: (m, 0)),
                pl.BlockSpec((K, N), lambda m: (0, 0)),   # resident weight
                pl.BlockSpec((1, N), lambda m: (0, 0)),
            ],
            out_specs=pl.BlockSpec((tm, N), lambda m: (m, 0)),
            compiler_params=pltpu.CompilerParams(
                dimension_semantics=("parallel",)),
        )(x, w_t, b.reshape(1, N))

    tn = _pick_tile(N, 256, 128)
    tk = _pick_tile(K, 256, 128)
    return pl.pallas_call(
        _linear_ktiled_kernel,
        out_shape=jax.ShapeDtypeStruct((M, N), out_dtype),
        grid=(M // tm, N // tn, K // tk),
        in_specs=[
            pl.BlockSpec((tm, tk), lambda m, n, k: (m, k)),
            pl.BlockSpec((tk, tn), lambda m, n, k: (k, n)),
            pl.BlockSpec((1, tn), lambda m, n, k: (0, n)),
        ],
        out_specs=pl.BlockSpec((tm, tn), lambda m, n, k: (m, n)),
        scratch_shapes=[pltpu.VMEM((tm, tn), jnp.float32)],
        compiler_params=pltpu.CompilerParams(
            dimension_semantics=("parallel", "parallel", "arbitrary")),
    )(x, w_t, b.reshape(1, N))


# ----------------------------------------------------------------------------
# Flash-style attention with fused per-head 1x1-conv distance bias.
#   grid = (B, S//TQ, S//TK); online softmax over the KV axis ("arbitrary").
#   q/k/v arrive head-packed lane-dense (TQ or TK, E); output (TQ, E).
# ----------------------------------------------------------------------------
def _attn_kernel(q_ref, k_ref, v_ref, dist_ref, mask_ref,
                 w1_ref, b1_ref, w2_ref, b2_ref,
                 o_ref, acc_ref, m_ref, l_ref, dc_ref,
                 *, n_heads, d_k, bias_dtype, exp_dtype, mxu_dtype):
    kb = pl.program_id(2)

    @pl.when(kb == 0)
    def _():
        acc_ref[...] = jnp.zeros_like(acc_ref)
        m_ref[...] = jnp.full(m_ref.shape, -jnp.inf, m_ref.dtype)
        l_ref[...] = jnp.zeros_like(l_ref)

    # ---- distance-conv bias, channel-major, staged in VMEM (dc_ref) --------
    # Only one relu channel tile is live in vregs at a time; the per-head
    # accumulation is an explicit, scheduled VMEM read-modify-write instead of
    # compiler spills of h live (TQ, TK) tiles.  1/sqrt(d_k) is pre-folded into
    # w2/b2 at parameter-prep time (prepare_params), so there are no per-
    # (head, channel) scalar multiplies here.
    for c in range(n_heads):
        w1c = w1_ref[c].astype(bias_dtype)
        b1c = b1_ref[c].astype(bias_dtype)
        relu_c = jnp.maximum(dist_ref[0].astype(bias_dtype) * w1c + b1c, 0.0)
        for hd in range(n_heads):
            contrib = w2_ref[hd, c].astype(bias_dtype) * relu_c
            if c == 0:
                dc_ref[hd] = contrib + b2_ref[hd].astype(bias_dtype)
            else:
                dc_ref[hd] = dc_ref[hd] + contrib

    neg_big = jnp.float32(-1000000000.0)

    # ---- per-head online-softmax flash update ------------------------------
    for hd in range(n_heads):
        sl = pl.ds(hd * d_k, d_k)
        qh = q_ref[0, 0, :, sl].astype(mxu_dtype)        # (TQ, d_k)
        kh = k_ref[0, 0, :, sl].astype(mxu_dtype)        # (TK, d_k)

        # QK^T contracting the last dims (no materialized k.T); f32 accumulate.
        s = lax.dot_general(qh, kh, (((1,), (1,)), ((), ())),
                            preferred_element_type=jnp.float32)   # (TQ, TK)
        s = s * dc_ref[hd]
        s = jnp.where(mask_ref[0] == 0, neg_big, s)

        m_prev = m_ref[hd]                                        # (TQ, 1)
        m_new = jnp.maximum(m_prev, jnp.max(s, axis=-1, keepdims=True))
        alpha = jnp.exp(m_prev - m_new)
        p = jnp.exp((s - m_new).astype(exp_dtype))
        l_ref[hd] = alpha * l_ref[hd] + jnp.sum(p, axis=-1, keepdims=True)
        m_ref[hd] = m_new

        vh = v_ref[0, 0, :, sl].astype(mxu_dtype)                 # (TK, d_k)
        acc_ref[hd] = alpha * acc_ref[hd] + jnp.dot(
            p.astype(mxu_dtype), vh, preferred_element_type=jnp.float32)

    @pl.when(kb == pl.num_programs(2) - 1)
    def _():
        # TODO(synk): eval-mode dropout is identity; training-mode dropout and
        # the materialized attention tensor (self.attn) are not implemented.
        for hd in range(n_heads):
            inv_l = pl.reciprocal(l_ref[hd], approx=True)
            o_ref[0, :, pl.ds(hd * d_k, d_k)] = (
                acc_ref[hd] * inv_l).astype(o_ref.dtype)


def pallas_attention(qkv, dist, mask, conv1_w, conv1_b, conv2_w, conv2_b,
                     *, n_heads, out_dtype, bias_dtype, mxu_dtype):
    _, B, S, E = qkv.shape
    d_k = E // n_heads
    # 128-aligned tiles (safe for the int8 mask packing); full-dim when small.
    TQ = _pick_tile(S, 256, 128)
    TK = _pick_tile(S, 256, 128)

    dist_c = dist.astype(bias_dtype)                   # bf16 in the bf16 mode
    mask_i8 = (mask != 0).astype(jnp.int8)             # 1-byte mask stream

    kernel = functools.partial(_attn_kernel, n_heads=n_heads, d_k=d_k,
                               bias_dtype=bias_dtype, exp_dtype=bias_dtype,
                               mxu_dtype=mxu_dtype)
    smem = pl.BlockSpec(memory_space=pltpu.MemorySpace.SMEM)

    flops = 4 * B * n_heads * S * S * d_k + 2 * B * n_heads * n_heads * S * S
    transcendentals = 2 * B * n_heads * S * S
    bytes_accessed = (4 * B * S * E * jnp.dtype(out_dtype).itemsize
                      + B * S * S * (jnp.dtype(bias_dtype).itemsize + 1))

    return pl.pallas_call(
        kernel,
        out_shape=jax.ShapeDtypeStruct((B, S, E), out_dtype),
        grid=(B, S // TQ, S // TK),
        in_specs=[
            pl.BlockSpec((1, 1, TQ, E), lambda b, qb, kb: (0, b, qb, 0)),  # q
            pl.BlockSpec((1, 1, TK, E), lambda b, qb, kb: (1, b, kb, 0)),  # k
            pl.BlockSpec((1, 1, TK, E), lambda b, qb, kb: (2, b, kb, 0)),  # v
            pl.BlockSpec((1, TQ, TK), lambda b, qb, kb: (b, qb, kb)),      # dist
            pl.BlockSpec((1, TQ, TK), lambda b, qb, kb: (b, qb, kb)),      # mask
            smem,  # conv1_w (h,)
            smem,  # conv1_b (h,)
            smem,  # conv2_w (h, h)  (sm_scale folded)
            smem,  # conv2_b (h,)    (sm_scale folded)
        ],
        out_specs=pl.BlockSpec((1, TQ, E), lambda b, qb, kb: (b, qb, 0)),
        scratch_shapes=[
            pltpu.VMEM((n_heads, TQ, d_k), jnp.float32),  # acc
            pltpu.VMEM((n_heads, TQ, 1), jnp.float32),    # running max m
            pltpu.VMEM((n_heads, TQ, 1), jnp.float32),    # running sum l
            pltpu.VMEM((n_heads, TQ, TK), bias_dtype),    # staged conv bias dc
        ],
        compiler_params=pltpu.CompilerParams(
            dimension_semantics=("parallel", "parallel", "arbitrary")),
        cost_estimate=pl.CostEstimate(flops=flops,
                                      transcendentals=transcendentals,
                                      bytes_accessed=bytes_accessed),
    )(qkv, qkv, qkv, dist_c, mask_i8, conv1_w, conv1_b, conv2_w, conv2_b)


# ----------------------------------------------------------------------------
# Parameter prep (done once): pre-transpose / stack weights, fold 1/sqrt(d_k).
# ----------------------------------------------------------------------------
def prepare_params(p, h):
    E = p["wq"].shape[0]
    sm_scale = 1.0 / math.sqrt(E // h)
    return dict(
        w_qkv=jnp.stack([p["wq"].T, p["wk"].T, p["wv"].T]),        # (3, E, E)
        b_qkv=jnp.stack([p["bq"], p["bk"], p["bv"]])[:, None, :],  # (3, 1, E)
        wo_t=p["wo"].T,                                            # (E, E)
        bo=p["bo"],                                                # (E,)
        conv1_w=p["conv1_w"], conv1_b=p["conv1_b"],
        conv2_w=p["conv2_w"] * sm_scale, conv2_b=p["conv2_b"] * sm_scale,
    )


# ----------------------------------------------------------------------------
# Full forward (glue in plain JAX; hot path in the Pallas kernels above)
#   use_bf16 : bf16 activations / weights / VALU+EUP math (v6e/v7x).
#   mxu_bf16 : bf16 MXU operands (f32 accumulation) even in the f32 path
#              (native MXU rate on all TPU generations).
# ----------------------------------------------------------------------------
def multi_headed_attention_forward(kparams, query, key, value, dist, mask, h,
                                   *, use_bf16=False, mxu_bf16=True):
    B, S, E = query.shape
    assert E % h == 0
    cdt = jnp.bfloat16 if use_bf16 else jnp.float32
    bias_dtype = jnp.bfloat16 if use_bf16 else jnp.float32
    mxu_dtype = jnp.bfloat16 if (use_bf16 or mxu_bf16) else jnp.float32

    # Pad S so flash tiling never falls back to full-S^2 dist/mask blocks
    # (VMEM cliff); padded keys get mask==0 -> -1e9, padded queries are sliced.
    S_pad = _round_up(S, 128) if S > 128 else _round_up(S, 8)
    pad = S_pad - S
    if pad:
        query = jnp.pad(query, ((0, 0), (0, pad), (0, 0)))
        key = jnp.pad(key, ((0, 0), (0, pad), (0, 0)))
        value = jnp.pad(value, ((0, 0), (0, pad), (0, 0)))
        dist = jnp.pad(dist, ((0, 0), (0, pad), (0, pad)))
        mask = jnp.pad(mask, ((0, 0), (0, pad), (0, pad)))

    xq = query.reshape(B * S_pad, E).astype(cdt)
    xk = key.reshape(B * S_pad, E).astype(cdt)
    xv = value.reshape(B * S_pad, E).astype(cdt)

    qkv = pallas_qkv_projection(
        xq, xk, xv, kparams["w_qkv"].astype(cdt), kparams["b_qkv"],
        out_dtype=cdt).reshape(3, B, S_pad, E)

    x_att = pallas_attention(
        qkv, dist, mask,
        kparams["conv1_w"], kparams["conv1_b"],
        kparams["conv2_w"], kparams["conv2_b"],
        n_heads=h, out_dtype=cdt,
        bias_dtype=bias_dtype, mxu_dtype=mxu_dtype)     # (B, S_pad, E)

    out = pallas_linear(x_att.reshape(B * S_pad, E),
                        kparams["wo_t"].astype(cdt), kparams["bo"],
                        out_dtype=jnp.float32).reshape(B, S_pad, E)
    if pad:
        out = out[:, :S, :]
    return out


# ----------------------------------------------------------------------------
# Pure-JAX reference (mirrors the PyTorch module in eval mode)
# ----------------------------------------------------------------------------
def reference_forward(params, query, key, value, dist, mask, h):
    B, S, E = query.shape
    d_k = E // h

    def lin(w, b, x):
        return x @ w.T + b

    def proj(w, b, x):
        return lin(w, b, x).reshape(B, S, h, d_k).transpose(0, 2, 1, 3)

    q = proj(params["wq"], params["bq"], query)
    k = proj(params["wk"], params["bk"], key)
    v = proj(params["wv"], params["bv"], value)

    relu1 = jnp.maximum(
        dist[:, None, :, :] * params["conv1_w"][None, :, None, None]
        + params["conv1_b"][None, :, None, None], 0.0)                # (B, h, S, S)
    dc = (jnp.einsum("oc,bcij->boij", params["conv2_w"], relu1)
          + params["conv2_b"][None, :, None, None])                   # (B, h, S, S)

    scores = jnp.einsum("bhqd,bhkd->bhqk", q, k) / math.sqrt(d_k)
    scores = scores * dc
    scores = jnp.where(mask[:, None, :, :] == 0.0, -1000000000.0, scores)
    p = jax.nn.softmax(scores, axis=-1)
    x = jnp.einsum("bhqk,bhkd->bhqd", p, v)
    x = x.transpose(0, 2, 1, 3).reshape(B, S, E)
    return lin(params["wo"], params["bo"], x)


# ----------------------------------------------------------------------------
if __name__ == "__main__":
    B, S, E, H = 2, 8, 32, 4

    root = jax.random.PRNGKey(0)
    ks = jax.random.split(root, 12)

    def init_linear(kw, kb, out_f, in_f):
        bound = 1.0 / math.sqrt(in_f)
        w = jax.random.uniform(kw, (out_f, in_f), jnp.float32, -bound, bound)
        b = jax.random.uniform(kb, (out_f,), jnp.float32, -bound, bound)
        return w, b

    wq, bq = init_linear(ks[0], ks[1], E, E)
    wk, bk = init_linear(ks[2], ks[3], E, E)
    wv, bv = init_linear(ks[4], ks[5], E, E)
    wo, bo = init_linear(ks[6], ks[7], E, E)

    # Conv2d(1,H,1): weight (H,1,1,1)->(H,); Conv2d(H,H,1): weight (H,H,1,1)->(H,H)
    conv1_w = jax.random.normal(ks[8], (H,), jnp.float32) * 0.5
    conv1_b = jax.random.normal(ks[9], (H,), jnp.float32) * 0.1
    conv2_w = jax.random.normal(ks[10], (H, H), jnp.float32) * 0.5
    conv2_b = jax.random.normal(ks[11], (H,), jnp.float32) * 0.1

    params = dict(wq=wq, bq=bq, wk=wk, bk=bk, wv=wv, bv=bv, wo=wo, bo=bo,
                  conv1_w=conv1_w, conv1_b=conv1_b,
                  conv2_w=conv2_w, conv2_b=conv2_b)
    kparams = prepare_params(params, H)

    dk = jax.random.split(jax.random.PRNGKey(42), 5)
    query = jax.random.normal(dk[0], (B, S, E), jnp.float32)
    key_in = jax.random.normal(dk[1], (B, S, E), jnp.float32)
    value = jax.random.normal(dk[2], (B, S, E), jnp.float32)
    dist = jax.random.normal(dk[3], (B, S, S), jnp.float32)
    mask = (jax.random.uniform(dk[4], (B, S, S)) > 0.3).astype(jnp.float32)
    mask = jnp.maximum(mask, jnp.eye(S, dtype=jnp.float32)[None])  # valid key per row

    ref = reference_forward(params, query, key_in, value, dist, mask, H)

    # 1) strict-f32 mode (f32 MXU operands): tight parity check.
    out_f32 = multi_headed_attention_forward(
        kparams, query, key_in, value, dist, mask, H,
        use_bf16=False, mxu_bf16=False)
    out_f32 = jax.block_until_ready(out_f32)
    assert out_f32.shape == (B, S, E)
    assert jnp.allclose(out_f32, ref, atol=5e-3, rtol=5e-3), \
        f"f32 max abs err {jnp.max(jnp.abs(out_f32 - ref))}"

    # 2) default mode: f32 activations, bf16 MXU operands (f32 accumulation).
    out_def = multi_headed_attention_forward(
        kparams, query, key_in, value, dist, mask, H)
    out_def = jax.block_until_ready(out_def)
    assert jnp.allclose(out_def, ref, atol=3e-2, rtol=3e-2), \
        f"default-path max abs err {jnp.max(jnp.abs(out_def - ref))}"

    # 3) full-bf16 mode (v6e/v7x VPU/EUP/MXU), loose tolerance.
    out_bf16 = multi_headed_attention_forward(
        kparams, query, key_in, value, dist, mask, H, use_bf16=True)
    out_bf16 = jax.block_until_ready(out_bf16)
    assert jnp.allclose(out_bf16, ref, atol=0.15, rtol=0.15), \
        f"bf16 max abs err {jnp.max(jnp.abs(out_bf16 - ref))}"

    # 4) non-aligned S exercises the wrapper-side padding + mask path.
    S2 = 9
    dk2 = jax.random.split(jax.random.PRNGKey(7), 5)
    q2 = jax.random.normal(dk2[0], (B, S2, E), jnp.float32)
    k2 = jax.random.normal(dk2[1], (B, S2, E), jnp.float32)
    v2 = jax.random.normal(dk2[2], (B, S2, E), jnp.float32)
    dist2 = jax.random.normal(dk2[3], (B, S2, S2), jnp.float32)
    mask2 = (jax.random.uniform(dk2[4], (B, S2, S2)) > 0.3).astype(jnp.float32)
    mask2 = jnp.maximum(mask2, jnp.eye(S2, dtype=jnp.float32)[None])
    ref2 = reference_forward(params, q2, k2, v2, dist2, mask2, H)
    out2 = multi_headed_attention_forward(kparams, q2, k2, v2, dist2, mask2, H)
    out2 = jax.block_until_ready(out2)
    assert out2.shape == (B, S2, E)
    assert jnp.allclose(out2, ref2, atol=3e-2, rtol=3e-2), \
        f"padded-path max abs err {jnp.max(jnp.abs(out2 - ref2))}"

    print("KERNEL_OK")
</pallas_src>

<mosaic_0001>
module attributes {stable_mosaic.version = 11 : i64} {
  func.func @_qkv_proj_resident_kernel(%arg0: i32, %arg1: memref<16x32xf32, #tpu.memory_space<vmem>>, %arg2: memref<16x32xf32, #tpu.memory_space<vmem>>, %arg3: memref<16x32xf32, #tpu.memory_space<vmem>>, %arg4: memref<3x32x32xf32, #tpu.memory_space<vmem>>, %arg5: memref<3x1x32xf32, #tpu.memory_space<vmem>>, %arg6: memref<3x16x32xf32, #tpu.memory_space<vmem>>) attributes {dimension_semantics = [#tpu.dimension_semantics<parallel>], iteration_bounds = array<i64: 1>, scalar_prefetch = 0 : i64, scratch_operands = 0 : i64, tpu.core_type = #tpu.core_type<tc>, window_params = [{transform_indices = @transform_0, window_bounds = array<i64: 16, 32>}, {transform_indices = @transform_1, window_bounds = array<i64: 16, 32>}, {transform_indices = @transform_2, window_bounds = array<i64: 16, 32>}, {pipeline_mode = #tpu.pipeline_mode<synchronous>, transform_indices = @transform_3, window_bounds = array<i64: 3, 32, 32>}, {pipeline_mode = #tpu.pipeline_mode<synchronous>, transform_indices = @transform_4, window_bounds = array<i64: 3, 1, 32>}, {transform_indices = @transform_5, window_bounds = array<i64: 3, 16, 32>}]} {
    %c0 = arith.constant 0 : index
    %c0_0 = arith.constant 0 : index
    %0 = vector.load %arg1[%c0, %c0_0] : memref<16x32xf32, #tpu.memory_space<vmem>>, vector<16x32xf32>
    %c0_1 = arith.constant 0 : index
    %c0_2 = arith.constant 0 : index
    %c0_3 = arith.constant 0 : index
    %1 = vector.load %arg4[%c0_1, %c0_2, %c0_3] : memref<3x32x32xf32, #tpu.memory_space<vmem>>, vector<1x32x32xf32>
    %2 = vector.shape_cast %1 : vector<1x32x32xf32> to vector<32x32xf32>
    %cst = arith.constant dense<0.000000e+00> : vector<16x32xf32>
    %3 = tpu.matmul %0, %2, %cst {dimension_numbers = #tpu.dot_dimension_numbers<[1], [0], [0], [1], [0, 0, 1, 1], [], []>} : vector<16x32xf32>, vector<32x32xf32>, vector<16x32xf32> -> vector<16x32xf32>
    %c0_4 = arith.constant 0 : index
    %c0_5 = arith.constant 0 : index
    %c0_6 = arith.constant 0 : index
    %4 = vector.load %arg5[%c0_4, %c0_5, %c0_6] : memref<3x1x32xf32, #tpu.memory_space<vmem>>, vector<1x1x32xf32>
    %5 = vector.shape_cast %4 : vector<1x1x32xf32> to vector<1x32xf32>
    %6 = vector.broadcast %5 : vector<1x32xf32> to vector<16x32xf32>
    %7 = arith.addf %3, %6 : vector<16x32xf32>
    %c0_7 = arith.constant 0 : index
    %c0_8 = arith.constant 0 : index
    %c0_9 = arith.constant 0 : index
    %8 = vector.load %arg6[%c0_7, %c0_8, %c0_9] : memref<3x16x32xf32, #tpu.memory_space<vmem>>, vector<1x16x32xf32>
    %9 = vector.shape_cast %8 : vector<1x16x32xf32> to vector<16x32xf32>
    %10 = vector.shape_cast %7 : vector<16x32xf32> to vector<1x16x32xf32>
    tpu.vector_store %arg6[%c0_7, %c0_8, %c0_9], %10 {strides = array<i32>} : memref<3x16x32xf32, #tpu.memory_space<vmem>>, vector<1x16x32xf32>,
    %c0_10 = arith.constant 0 : index
    %c0_11 = arith.constant 0 : index
    %11 = vector.load %arg2[%c0_10, %c0_11] : memref<16x32xf32, #tpu.memory_space<vmem>>, vector<16x32xf32>
    %c1 = arith.constant 1 : index
    %c0_12 = arith.constant 0 : index
    %c0_13 = arith.constant 0 : index
    %12 = vector.load %arg4[%c1, %c0_12, %c0_13] : memref<3x32x32xf32, #tpu.memory_space<vmem>>, vector<1x32x32xf32>
    %13 = vector.shape_cast %12 : vector<1x32x32xf32> to vector<32x32xf32>
    %cst_14 = arith.constant dense<0.000000e+00> : vector<16x32xf32>
    %14 = tpu.matmul %11, %13, %cst_14 {dimension_numbers = #tpu.dot_dimension_numbers<[1], [0], [0], [1], [0, 0, 1, 1], [], []>} : vector<16x32xf32>, vector<32x32xf32>, vector<16x32xf32> -> vector<16x32xf32>
    %c1_15 = arith.constant 1 : index
    %c0_16 = arith.constant 0 : index
    %c0_17 = arith.constant 0 : index
    %15 = vector.load %arg5[%c1_15, %c0_16, %c0_17] : memref<3x1x32xf32, #tpu.memory_space<vmem>>, vector<1x1x32xf32>
    %16 = vector.shape_cast %15 : vector<1x1x32xf32> to vector<1x32xf32>
    %17 = vector.broadcast %16 : vector<1x32xf32> to vector<16x32xf32>
    %18 = arith.addf %14, %17 : vector<16x32xf32>
    %c1_18 = arith.constant 1 : index
    %c0_19 = arith.constant 0 : index
    %c0_20 = arith.constant 0 : index
    %19 = vector.load %arg6[%c1_18, %c0_19, %c0_20] : memref<3x16x32xf32, #tpu.memory_space<vmem>>, vector<1x16x32xf32>
    %20 = vector.shape_cast %19 : vector<1x16x32xf32> to vector<16x32xf32>
    %21 = vector.shape_cast %18 : vector<16x32xf32> to vector<1x16x32xf32>
    tpu.vector_store %arg6[%c1_18, %c0_19, %c0_20], %21 {strides = array<i32>} : memref<3x16x32xf32, #tpu.memory_space<vmem>>, vector<1x16x32xf32>,
    %c0_21 = arith.constant 0 : index
    %c0_22 = arith.constant 0 : index
    %22 = vector.load %arg3[%c0_21, %c0_22] : memref<16x32xf32, #tpu.memory_space<vmem>>, vector<16x32xf32>
    %c2 = arith.constant 2 : index
    %c0_23 = arith.constant 0 : index
    %c0_24 = arith.constant 0 : index
    %23 = vector.load %arg4[%c2, %c0_23, %c0_24] : memref<3x32x32xf32, #tpu.memory_space<vmem>>, vector<1x32x32xf32>
    %24 = vector.shape_cast %23 : vector<1x32x32xf32> to vector<32x32xf32>
    %cst_25 = arith.constant dense<0.000000e+00> : vector<16x32xf32>
    %25 = tpu.matmul %22, %24, %cst_25 {dimension_numbers = #tpu.dot_dimension_numbers<[1], [0], [0], [1], [0, 0, 1, 1], [], []>} : vector<16x32xf32>, vector<32x32xf32>, vector<16x32xf32> -> vector<16x32xf32>
    %c2_26 = arith.constant 2 : index
    %c0_27 = arith.constant 0 : index
    %c0_28 = arith.constant 0 : index
    %26 = vector.load %arg5[%c2_26, %c0_27, %c0_28] : memref<3x1x32xf32, #tpu.memory_space<vmem>>, vector<1x1x32xf32>
    %27 = vector.shape_cast %26 : vector<1x1x32xf32> to vector<1x32xf32>
    %28 = vector.broadcast %27 : vector<1x32xf32> to vector<16x32xf32>
    %29 = arith.addf %25, %28 : vector<16x32xf32>
    %c2_29 = arith.constant 2 : index
    %c0_30 = arith.constant 0 : index
    %c0_31 = arith.constant 0 : index
    %30 = vector.load %arg6[%c2_29, %c0_30, %c0_31] : memref<3x16x32xf32, #tpu.memory_space<vmem>>, vector<1x16x32xf32>
    %31 = vector.shape_cast %30 : vector<1x16x32xf32> to vector<16x32xf32>
    %32 = vector.shape_cast %29 : vector<16x32xf32> to vector<1x16x32xf32>
    tpu.vector_store %arg6[%c2_29, %c0_30, %c0_31], %32 {strides = array<i32>} : memref<3x16x32xf32, #tpu.memory_space<vmem>>, vector<1x16x32xf32>,
    return
  }
  func.func @transform_0(%arg0: i32) -> (i32, i32) {
    %c0_i32 = arith.constant 0 : i32
    %c0_i32_0 = arith.constant 0 : i32
    return %arg0, %c0_i32 : i32, i32
  }
  func.func @transform_1(%arg0: i32) -> (i32, i32) {
    %c0_i32 = arith.constant 0 : i32
    %c0_i32_0 = arith.constant 0 : i32
    return %arg0, %c0_i32 : i32, i32
  }
  func.func @transform_2(%arg0: i32) -> (i32, i32) {
    %c0_i32 = arith.constant 0 : i32
    %c0_i32_0 = arith.constant 0 : i32
    return %arg0, %c0_i32 : i32, i32
  }
  func.func @transform_3(%arg0: i32) -> (i32, i32, i32) {
    %c0_i32 = arith.constant 0 : i32
    %c0_i32_0 = arith.constant 0 : i32
    %c0_i32_1 = arith.constant 0 : i32
    %c0_i32_2 = arith.constant 0 : i32
    return %c0_i32, %c0_i32_0, %c0_i32_1 : i32, i32, i32
  }
  func.func @transform_4(%arg0: i32) -> (i32, i32, i32) {
    %c0_i32 = arith.constant 0 : i32
    %c0_i32_0 = arith.constant 0 : i32
    %c0_i32_1 = arith.constant 0 : i32
    %c0_i32_2 = arith.constant 0 : i32
    return %c0_i32, %c0_i32_0, %c0_i32_1 : i32, i32, i32
  }
  func.func @transform_5(%arg0: i32) -> (i32, i32, i32) {
    %c0_i32 = arith.constant 0 : i32
    %c0_i32_0 = arith.constant 0 : i32
    %c0_i32_1 = arith.constant 0 : i32
    return %c0_i32, %arg0, %c0_i32_0 : i32, i32, i32
  }
}

</mosaic_0001>

<llo_original>
// kernel: tpu_custom_call.1
$region0: #{tpu_custom_call.1}
  #allocation0 [shape = 'u32[]', space=smem, size = 0x4, offset = 0x4, fixed_abs, tag = 'smem constant byte address 0x4 - core index']
  #allocation1 [shape = 'u32[144,128]{1,0:T(1,128)}', space=vmem, size = 0x12000, scoped, tag = 'internal scratch']
  %s0 = inlined_call_operand.hbm [shape: f32[16,32], index: 0, kind: input, shape index: {}]
  %s1 = inlined_call_operand.hbm [shape: f32[16,32], index: 1, kind: input, shape index: {}]
  %s2 = inlined_call_operand.hbm [shape: f32[16,32], index: 2, kind: input, shape index: {}]
  %s3 = inlined_call_operand.hbm [shape: f32[3,32,32], index: 3, kind: input, shape index: {}]
  %s4 = inlined_call_operand.vmem [shape: f32[3,1,32], index: 4, kind: input, shape index: {}]
  %s5 = inlined_call_operand.hbm [shape: f32[3,16,32], index: 5, kind: output, shape index: {}]
  %s6 = sld [smem:[#allocation0]]
  $region46: #{tpu_custom_call.1} parent=0
    _
  %s8 = ssub.s32 1, %s6
  %s9 = scalar_select 0, %s8, %s6
  $region1: #{tpu_custom_call.1} parent=0
    #allocation2 [shape = 'u8[8192]{0}', space=vmem, size = 0x2000, scoped, tag = 'input window, operand 0, single buffered']
    #allocation3 [shape = 's32[1]{0}', space=sflag, size = 0x4, scoped, tag = 'scoped memory for tpu_custom_call.1']
    #allocation4 [shape = 's32[1]{0}', space=sflag, size = 0x4, scoped, tag = 'scoped memory for tpu_custom_call.1']
    #allocation5 [shape = 'u8[8192]{0}', space=vmem, size = 0x2000, scoped, tag = 'input window, operand 1, single buffered']
    #allocation6 [shape = 's32[1]{0}', space=sflag, size = 0x4, scoped, tag = 'scoped memory for tpu_custom_call.1']
    #allocation7 [shape = 'u8[8192]{0}', space=vmem, size = 0x2000, scoped, tag = 'input window, operand 2, single buffered']
    #allocation8 [shape = 'u8[49152]{0}', space=vmem, size = 0xc000, scoped, tag = 'input window, operand 3, single buffered']
    #allocation9 [shape = 's32[1]{0}', space=sflag, size = 0x4, scoped, tag = 'scoped memory for tpu_custom_call.1']
    #allocation10 [shape = 'u8[24576]{0}', space=vmem, size = 0x6000, scoped, tag = 'output window, operand 0, single buffered']
    %10 = vsyncpa [#allocation3], 0
    %11 = vsyncpa [#allocation6], 0
    %12 = vsyncpa [#allocation9], 0
    %13 = vsyncpa [#allocation4], 0
    // Predicated region
    $region2: #{tpu_custom_call.1} parent=1 // pred_check
      _
    $region3: #{tpu_custom_call.1} parent=1 // pred_check_branch
      %15 = sbr.rel (0) target = $region5
    $region4: #{tpu_custom_call.1} parent=1 // pred_region
      %s17 = ssub.s32 256, 256
      %18 = vsyncadd [#allocation3], %s17
      %s19 = sshll.u32 [#allocation2], 4
      %s20 = int_to_ptr.vmem [resolvable:$true] %s19
      %25 = dma.hbm_to_vmem [thread:$0]  %s0, 256, %s20, [#allocation3], 128, 128, 8
    $region5: #{tpu_custom_call.1} parent=1 // pred_fallthru
      _
    // Predicated region
    $region6: #{tpu_custom_call.1} parent=1 // pred_check
      _
    $region7: #{tpu_custom_call.1} parent=1 // pred_check_branch
      %27 = sbr.rel (0) target = $region9
    $region8: #{tpu_custom_call.1} parent=1 // pred_region
      %s29 = ssub.s32 256, 256
      %30 = vsyncadd [#allocation6], %s29
      %s31 = sshll.u32 [#allocation5], 4
      %s32 = int_to_ptr.vmem [resolvable:$true] %s31
      %37 = dma.hbm_to_vmem [thread:$0]  %s1, 256, %s32, [#allocation6], 128, 128, 8
    $region9: #{tpu_custom_call.1} parent=1 // pred_fallthru
      _
    // Predicated region
    $region10: #{tpu_custom_call.1} parent=1 // pred_check
      _
    $region11: #{tpu_custom_call.1} parent=1 // pred_check_branch
      %39 = sbr.rel (0) target = $region13
    $region12: #{tpu_custom_call.1} parent=1 // pred_region
      %s41 = ssub.s32 256, 256
      %42 = vsyncadd [#allocation6], %s41
      %s43 = sshll.u32 [#allocation7], 4
      %s44 = int_to_ptr.vmem [resolvable:$true] %s43
      %49 = dma.hbm_to_vmem [thread:$0]  %s2, 256, %s44, [#allocation6], 128, 128, 8
    $region13: #{tpu_custom_call.1} parent=1 // pred_fallthru
      _
    // Predicated region
    $region14: #{tpu_custom_call.1} parent=1 // pred_check
      _
    $region15: #{tpu_custom_call.1} parent=1 // pred_check_branch
      %51 = sbr.rel (0) target = $region17
    $region16: #{tpu_custom_call.1} parent=1 // pred_region
      %s53 = ssub.s32 1536, 1536
      %54 = vsyncadd [#allocation9], %s53
      %s55 = sshll.u32 [#allocation8], 4
      %s56 = int_to_ptr.vmem [resolvable:$true] %s55
      %61 = dma.hbm_to_vmem [thread:$0]  %s3, 1536, %s56, [#allocation9], 128, 128, 8
    $region17: #{tpu_custom_call.1} parent=1 // pred_fallthru
      _
    // Predicated region
    $region18: #{tpu_custom_call.1} parent=1 // pred_check
      _
    $region19: #{tpu_custom_call.1} parent=1 // pred_check_branch
      %63 = sbr.rel (0) target = $region21
    $region20: #{tpu_custom_call.1} parent=1 // pred_region
      _
    $region21: #{tpu_custom_call.1} parent=1 // pred_fallthru
      _
    // Predicated region
    $region22: #{tpu_custom_call.1} parent=1 // pred_check
      _
    $region23: #{tpu_custom_call.1} parent=1 // pred_check_branch
      %65 = sbr.rel (0) target = $region25
    $region24: #{tpu_custom_call.1} parent=1 // pred_region
      %66 = dma.done [#allocation3], 256
    $region25: #{tpu_custom_call.1} parent=1 // pred_fallthru
      _
    // Predicated region
    $region26: #{tpu_custom_call.1} parent=1 // pred_check
      _
    $region27: #{tpu_custom_call.1} parent=1 // pred_check_branch
      %68 = sbr.rel (0) target = $region29
    $region28: #{tpu_custom_call.1} parent=1 // pred_region
      %69 = dma.done [#allocation6], 256
    $region29: #{tpu_custom_call.1} parent=1 // pred_fallthru
      _
    // Predicated region
    $region30: #{tpu_custom_call.1} parent=1 // pred_check
      _
    $region31: #{tpu_custom_call.1} parent=1 // pred_check_branch
      %71 = sbr.rel (0) target = $region33
    $region32: #{tpu_custom_call.1} parent=1 // pred_region
      %72 = dma.done [#allocation6], 256
    $region33: #{tpu_custom_call.1} parent=1 // pred_fallthru
      _
    // Predicated region
    $region34: #{tpu_custom_call.1} parent=1 // pred_check
      _
    $region35: #{tpu_custom_call.1} parent=1 // pred_check_branch
      %74 = sbr.rel (0) target = $region37
    $region36: #{tpu_custom_call.1} parent=1 // pred_region
      %75 = dma.done [#allocation9], 1536
    $region37: #{tpu_custom_call.1} parent=1 // pred_fallthru
      _
    %v76 = vld [vmem:[#allocation2] sm:$0xff]
    %v77 = vld [vmem:[#allocation2 + $0x8] sm:$0xff]
    %v78 = vld [vmem:[#allocation8] sm:$0xff]
    %v79 = vld [vmem:[#allocation8 + $0x8] sm:$0xff]
    %v80 = vld [vmem:[#allocation8 + $0x10] sm:$0xff]
    %v81 = vld [vmem:[#allocation8 + $0x18] sm:$0xff]
    %v82 = vld [vmem:[%s4] sm:$0x1]
    %v84 = vlaneseq
    %v85 = vshrl.u32 %v84, 7
    %v86 = vsub.s32 0, %v85
    %v87 = vrot.slane %v82, %v86
    %vm89 = vcmask 261120
    %v91 = vsel %vm89, %v76, 0
    %v94 = vsel %vm89, %v77, 0
    %96 = vmatprep.subr.mxu0 0.0
    %97 = vmatpush1.msra.mxu0 %v78
    %98 = vmatprep.subr.mxu0 0.0
    %99 = vmatpush1.msra.mxu0 %v79
    %100 = vmatprep.subr.mxu0 0.0
    %101 = vmatpush1.msra.mxu0 %v80
    %102 = vmatprep.subr.mxu0 0.0
    %103 = vmatpush1.msra.mxu0 %v81
    %104 = vmatprep.subr.mxu0 0.0
    %105 = vmatpush1.msra.mxu0 0.0
    %106 = vmatprep.subr.mxu0 0.0
    %107 = vmatpush1.msra.mxu0 0.0
    %108 = vmatprep.subr.mxu0 0.0
    %109 = vmatpush1.msra.mxu0 0.0
    %110 = vmatprep.subr.mxu0 0.0
    %111 = vmatpush1.msra.mxu0 0.0
    %112 = vmatprep.subr.mxu0 0.0
    %113 = vmatpush1.msra.mxu0 0.0
    %114 = vmatprep.subr.mxu0 0.0
    %115 = vmatpush1.msra.mxu0 0.0
    %116 = vmatprep.subr.mxu0 0.0
    %117 = vmatpush1.msra.mxu0 0.0
    %118 = vmatprep.subr.mxu0 0.0
    %119 = vmatpush1.msra.mxu0 0.0
    %120 = vmatprep.subr.mxu0 0.0
    %121 = vmatpush1.msra.mxu0 0.0
    %122 = vmatprep.subr.mxu0 0.0
    %123 = vmatpush1.msra.mxu0 0.0
    %124 = vmatprep.subr.mxu0 0.0
    %125 = vmatpush1.msra.mxu0 0.0
    %126 = vmatprep.subr.mxu0 0.0
    %127 = vmatpush1.msra.mxu0 0.0
    %128 = vmatprep.subr.mxu0 0.0
    %129 = vmatpush1.msra.mxu0 0.0
    %130 = vmatprep.subr.mxu0 0.0
    %131 = vmatpush1.msra.mxu0 0.0
    %132 = vmatprep.subr.mxu0 0.0
    %133 = vmatpush1.msra.mxu0 0.0
    %134 = vmatprep.subr.mxu0 0.0
    %135 = vmatpush1.msra.mxu0 0.0
    %136 = vmatprep.subr.mxu0 0.0
    %137 = vmatpush1.msra.mxu0 0.0
    %138 = vmatprep.subr.mxu0 0.0
    %139 = vmatpush1.msra.mxu0 0.0
    %140 = vmatprep.subr.mxu0 0.0
    %141 = vmatpush1.msra.mxu0 0.0
    %142 = vmatprep.subr.mxu0 0.0
    %143 = vmatpush1.msra.mxu0 0.0
    %144 = vmatprep.subr.mxu0 0.0
    %145 = vmatpush1.msra.mxu0 0.0
    %146 = vmatprep.subr.mxu0 0.0
    %147 = vmatpush1.msra.mxu0 0.0
    %148 = vmatprep.subr.mxu0 0.0
    %149 = vmatpush1.msra.mxu0 0.0
    %150 = vmatprep.subr.mxu0 0.0
    %151 = vmatpush1.msra.mxu0 0.0
    %152 = vmatprep.subr.mxu0 0.0
    %153 = vmatpush1.msra.mxu0 0.0
    %154 = vmatprep.subr.mxu0 0.0
    %155 = vmatpush1.msra.mxu0 0.0
    %156 = vmatprep.subr.mxu0 0.0
    %157 = vmatpush1.msra.mxu0 0.0
    %158 = vmatprep.subr.mxu0 0.0
    %159 = vmatpush1.msra.mxu0 0.0
    %160 = vmatprep.mubr.f32.mxu0 0.0
    %161 = vmatmul.mubr.f32.gmra.mrb[0].mxu0 %v91
    %v162 = vpop.f32.mrb[0].mxu0
    %v163 = vadd.f32 %v87, %v162
    %v164 = vpop.f32.mrb[0].mxu0
    %165 = vmatprep.mubr.f32.mxu0 0.0
    %166 = vmatmul.mubr.f32.gmra.mrb[0].mxu0 %v94
    %v167 = vpop.f32.mrb[0].mxu0
    %v168 = vadd.f32 %v87, %v167
    %v169 = vpop.f32.mrb[0].mxu0
    %170 = vdwg.mxu0
    %171 = vst.msk [vmem:[#allocation10] sm:$0xff] %vm89, %v163
    %172 = vst.msk [vmem:[#allocation10 + $0x8] sm:$0xff] %vm89, %v168
    %v173 = vld [vmem:[#allocation5] sm:$0xff]
    %v174 = vld [vmem:[#allocation5 + $0x8] sm:$0xff]
    %s175 = scalar_lea.vmem [#allocation8], 32
    %v176 = vld [vmem:[%s175] sm:$0xff]
    %v177 = vld [vmem:[%s175 + $0x8] sm:$0xff]
    %v178 = vld [vmem:[%s175 + $0x10] sm:$0xff]
    %v179 = vld [vmem:[%s175 + $0x18] sm:$0xff]
    %s180 = scalar_lea.vmem %s4, 1
    %v181 = vld [vmem:[%s180] sm:$0x1]
    %v183 = vlaneseq
    %v184 = vshrl.u32 %v183, 7
    %v185 = vsub.s32 0, %v184
    %v186 = vrot.slane %v181, %v185
    %v189 = vsel %vm89, %v173, 0
    %v192 = vsel %vm89, %v174, 0
    %194 = vmatprep.subr.mxu0 0.0
    %195 = vmatpush1.msra.mxu0 %v176
    %196 = vmatprep.subr.mxu0 0.0
    %197 = vmatpush1.msra.mxu0 %v177
    %198 = vmatprep.subr.mxu0 0.0
    %199 = vmatpush1.msra.mxu0 %v178
    %200 = vmatprep.subr.mxu0 0.0
    %201 = vmatpush1.msra.mxu0 %v179
    %202 = vmatprep.subr.mxu0 0.0
    %203 = vmatpush1.msra.mxu0 0.0
    %204 = vmatprep.subr.mxu0 0.0
    %205 = vmatpush1.msra.mxu0 0.0
    %206 = vmatprep.subr.mxu0 0.0
    %207 = vmatpush1.msra.mxu0 0.0
    %208 = vmatprep.subr.mxu0 0.0
    %209 = vmatpush1.msra.mxu0 0.0
    %210 = vmatprep.subr.mxu0 0.0
    %211 = vmatpush1.msra.mxu0 0.0
    %212 = vmatprep.subr.mxu0 0.0
    %213 = vmatpush1.msra.mxu0 0.0
    %214 = vmatprep.subr.mxu0 0.0
    %215 = vmatpush1.msra.mxu0 0.0
    %216 = vmatprep.subr.mxu0 0.0
    %217 = vmatpush1.msra.mxu0 0.0
    %218 = vmatprep.subr.mxu0 0.0
    %219 = vmatpush1.msra.mxu0 0.0
    %220 = vmatprep.subr.mxu0 0.0
    %221 = vmatpush1.msra.mxu0 0.0
    %222 = vmatprep.subr.mxu0 0.0
    %223 = vmatpush1.msra.mxu0 0.0
    %224 = vmatprep.subr.mxu0 0.0
    %225 = vmatpush1.msra.mxu0 0.0
    %226 = vmatprep.subr.mxu0 0.0
    %227 = vmatpush1.msra.mxu0 0.0
    %228 = vmatprep.subr.mxu0 0.0
    %229 = vmatpush1.msra.mxu0 0.0
    %230 = vmatprep.subr.mxu0 0.0
    %231 = vmatpush1.msra.mxu0 0.0
    %232 = vmatprep.subr.mxu0 0.0
    %233 = vmatpush1.msra.mxu0 0.0
    %234 = vmatprep.subr.mxu0 0.0
    %235 = vmatpush1.msra.mxu0 0.0
    %236 = vmatprep.subr.mxu0 0.0
    %237 = vmatpush1.msra.mxu0 0.0
    %238 = vmatprep.subr.mxu0 0.0
    %239 = vmatpush1.msra.mxu0 0.0
    %240 = vmatprep.subr.mxu0 0.0
    %241 = vmatpush1.msra.mxu0 0.0
    %242 = vmatprep.subr.mxu0 0.0
    %243 = vmatpush1.msra.mxu0 0.0
    %244 = vmatprep.subr.mxu0 0.0
    %245 = vmatpush1.msra.mxu0 0.0
    %246 = vmatprep.subr.mxu0 0.0
    %247 = vmatpush1.msra.mxu0 0.0
    %248 = vmatprep.subr.mxu0 0.0
    %249 = vmatpush1.msra.mxu0 0.0
    %250 = vmatprep.subr.mxu0 0.0
    %251 = vmatpush1.msra.mxu0 0.0
    %252 = vmatprep.subr.mxu0 0.0
    %253 = vmatpush1.msra.mxu0 0.0
    %254 = vmatprep.subr.mxu0 0.0
    %255 = vmatpush1.msra.mxu0 0.0
    %256 = vmatprep.subr.mxu0 0.0
    %257 = vmatpush1.msra.mxu0 0.0
    %258 = vmatprep.mubr.f32.mxu0 0.0
    %259 = vmatmul.mubr.f32.gmra.mrb[0].mxu0 %v189
    %v260 = vpop.f32.mrb[0].mxu0
    %v261 = vadd.f32 %v186, %v260
    %v262 = vpop.f32.mrb[0].mxu0
    %263 = vmatprep.mubr.f32.mxu0 0.0
    %264 = vmatmul.mubr.f32.gmra.mrb[0].mxu0 %v192
    %v265 = vpop.f32.mrb[0].mxu0
    %v266 = vadd.f32 %v186, %v265
    %v267 = vpop.f32.mrb[0].mxu0
    %268 = vdwg.mxu0
    %s269 = scalar_lea.vmem [#allocation10], 16
    %270 = vst.msk [vmem:[%s269] sm:$0xff] %vm89, %v261
    %271 = vst.msk [vmem:[%s269 + $0x8] sm:$0xff] %vm89, %v266
    %v272 = vld [vmem:[#allocation7] sm:$0xff]
    %v273 = vld [vmem:[#allocation7 + $0x8] sm:$0xff]
    %s274 = scalar_lea.vmem [#allocation8], 64
    %v275 = vld [vmem:[%s274] sm:$0xff]
    %v276 = vld [vmem:[%s274 + $0x8] sm:$0xff]
    %v277 = vld [vmem:[%s274 + $0x10] sm:$0xff]
    %v278 = vld [vmem:[%s274 + $0x18] sm:$0xff]
    %s279 = scalar_lea.vmem %s4, 2
    %v280 = vld [vmem:[%s279] sm:$0x1]
    %v282 = vlaneseq
    %v283 = vshrl.u32 %v282, 7
    %v284 = vsub.s32 0, %v283
    %v285 = vrot.slane %v280, %v284
    %v288 = vsel %vm89, %v272, 0
    %v291 = vsel %vm89, %v273, 0
    %293 = vmatprep.subr.mxu0 0.0
    %294 = vmatpush1.msra.mxu0 %v275
    %295 = vmatprep.subr.mxu0 0.0
    %296 = vmatpush1.msra.mxu0 %v276
    %297 = vmatprep.subr.mxu0 0.0
    %298 = vmatpush1.msra.mxu0 %v277
    %299 = vmatprep.subr.mxu0 0.0
    %300 = vmatpush1.msra.mxu0 %v278
    %301 = vmatprep.subr.mxu0 0.0
    %302 = vmatpush1.msra.mxu0 0.0
    %303 = vmatprep.subr.mxu0 0.0
    %304 = vmatpush1.msra.mxu0 0.0
    %305 = vmatprep.subr.mxu0 0.0
    %306 = vmatpush1.msra.mxu0 0.0
    %307 = vmatprep.subr.mxu0 0.0
    %308 = vmatpush1.msra.mxu0 0.0
    %309 = vmatprep.subr.mxu0 0.0
    %310 = vmatpush1.msra.mxu0 0.0
    %311 = vmatprep.subr.mxu0 0.0
    %312 = vmatpush1.msra.mxu0 0.0
    %313 = vmatprep.subr.mxu0 0.0
    %314 = vmatpush1.msra.mxu0 0.0
    %315 = vmatprep.subr.mxu0 0.0
    %316 = vmatpush1.msra.mxu0 0.0
    %317 = vmatprep.subr.mxu0 0.0
    %318 = vmatpush1.msra.mxu0 0.0
    %319 = vmatprep.subr.mxu0 0.0
    %320 = vmatpush1.msra.mxu0 0.0
    %321 = vmatprep.subr.mxu0 0.0
    %322 = vmatpush1.msra.mxu0 0.0
    %323 = vmatprep.subr.mxu0 0.0
    %324 = vmatpush1.msra.mxu0 0.0
    %325 = vmatprep.subr.mxu0 0.0
    %326 = vmatpush1.msra.mxu0 0.0
    %327 = vmatprep.subr.mxu0 0.0
    %328 = vmatpush1.msra.mxu0 0.0
    %329 = vmatprep.subr.mxu0 0.0
    %330 = vmatpush1.msra.mxu0 0.0
    %331 = vmatprep.subr.mxu0 0.0
    %332 = vmatpush1.msra.mxu0 0.0
    %333 = vmatprep.subr.mxu0 0.0
    %334 = vmatpush1.msra.mxu0 0.0
    %335 = vmatprep.subr.mxu0 0.0
    %336 = vmatpush1.msra.mxu0 0.0
    %337 = vmatprep.subr.mxu0 0.0
    %338 = vmatpush1.msra.mxu0 0.0
    %339 = vmatprep.subr.mxu0 0.0
    %340 = vmatpush1.msra.mxu0 0.0
    %341 = vmatprep.subr.mxu0 0.0
    %342 = vmatpush1.msra.mxu0 0.0
    %343 = vmatprep.subr.mxu0 0.0
    %344 = vmatpush1.msra.mxu0 0.0
    %345 = vmatprep.subr.mxu0 0.0
    %346 = vmatpush1.msra.mxu0 0.0
    %347 = vmatprep.subr.mxu0 0.0
    %348 = vmatpush1.msra.mxu0 0.0
    %349 = vmatprep.subr.mxu0 0.0
    %350 = vmatpush1.msra.mxu0 0.0
    %351 = vmatprep.subr.mxu0 0.0
    %352 = vmatpush1.msra.mxu0 0.0
    %353 = vmatprep.subr.mxu0 0.0
    %354 = vmatpush1.msra.mxu0 0.0
    %355 = vmatprep.subr.mxu0 0.0
    %356 = vmatpush1.msra.mxu0 0.0
    %357 = vmatprep.mubr.f32.mxu0 0.0
    %358 = vmatmul.mubr.f32.gmra.mrb[0].mxu0 %v288
    %v359 = vpop.f32.mrb[0].mxu0
    %v360 = vadd.f32 %v285, %v359
    %v361 = vpop.f32.mrb[0].mxu0
    %362 = vmatprep.mubr.f32.mxu0 0.0
    %363 = vmatmul.mubr.f32.gmra.mrb[0].mxu0 %v291
    %v364 = vpop.f32.mrb[0].mxu0
    %v365 = vadd.f32 %v285, %v364
    %v366 = vpop.f32.mrb[0].mxu0
    %367 = vdwg.mxu0
    %s368 = scalar_lea.vmem [#allocation10], 32
    %369 = vst.msk [vmem:[%s368] sm:$0xff] %vm89, %v360
    %370 = vst.msk [vmem:[%s368 + $0x8] sm:$0xff] %vm89, %v365
    // Predicated region
    $region38: #{tpu_custom_call.1} parent=1 // pred_check
      _
    $region39: #{tpu_custom_call.1} parent=1 // pred_check_branch
      %372 = sbr.rel (0) target = $region41
    $region40: #{tpu_custom_call.1} parent=1 // pred_region
      %s374 = ssub.s32 768, 768
      %375 = vsyncadd [#allocation4], %s374
      %s376 = sshll.u32 [#allocation10], 4
      %s377 = int_to_ptr.vmem [resolvable:$true] %s376
      %382 = dma.vmem_to_hbm [thread:$0]  %s377, 768, %s5, [#allocation4], 128, 128, 8
    $region41: #{tpu_custom_call.1} parent=1 // pred_fallthru
      _
    // Predicated region
    $region42: #{tpu_custom_call.1} parent=1 // pred_check
      _
    $region43: #{tpu_custom_call.1} parent=1 // pred_check_branch
      %384 = sbr.rel (0) target = $region45
    $region44: #{tpu_custom_call.1} parent=1 // pred_region
      %385 = dma.done [#allocation4], 768
    $region45: #{tpu_custom_call.1} parent=1 // pred_fallthru
      _
    %386 = vsyncpa [#allocation3], 1
    %387 = vsyncpa [#allocation6], 1
    %388 = vsyncpa [#allocation9], 1
    %389 = vsyncpa [#allocation4], 1

</llo_original>
